<compile_context>
chip_gen: v6e
topology: v6e:2x2x1
jax: 0.10.0
libtpu: 0.0.40
codegen_flags: <defaults>
</compile_context>

<pallas_src>
import jax
import jax.numpy as jnp
from jax import lax
from jax.experimental import pallas as pl
from jax.experimental.pallas import tpu as pltpu


def _round_up(x, m):
    return ((x + m - 1) // m) * m


def _make_ce_kernel(v_real, padding_idx):
    """Build the fused logits -> streaming log-softmax -> NLL kernel."""

    def kernel(x_ref, w_ref, b_ref, tgt_ref, out_ref, m_s, l_s, t_s):
        # x_ref:   (tm, H)      bf16   token features
        # w_ref:   (H,  tv)     bf16   decoder weight tile (vocab slice)
        # b_ref:   (1,  tv)     f32    decoder bias tile
        # tgt_ref: (tm, 1)      i32    target ids (constant across vocab steps)
        # out_ref: (1, 1, 128)  f32    per-token-tile partial loss (lane dense)
        # m_s/l_s/t_s: (tm, 1)  f32    running max / exp-sum / target logit
        j = pl.program_id(1)
        nv = pl.num_programs(1)
        tv = w_ref.shape[1]

        @pl.when(j == 0)
        def _():
            m_s[...] = jnp.full_like(m_s, -1e30)
            l_s[...] = jnp.zeros_like(l_s)
            t_s[...] = jnp.zeros_like(t_s)

        # (tm, tv) logits tile: bf16 x bf16 on the MXU, f32 accumulation.
        logits = jnp.dot(x_ref[...], w_ref[...],
                         preferred_element_type=jnp.float32)
        logits = logits + b_ref[...]                         # (1, tv) broadcast

        tgt = tgt_ref[...]                                   # (tm, 1) int32
        col = j * tv + lax.broadcasted_iota(jnp.int32, logits.shape, 1)

        # streaming (online) log-sum-exp over the vocab axis
        m_prev = m_s[...]
        m_new = jnp.maximum(m_prev, jnp.max(logits, axis=-1, keepdims=True))
        l_s[...] = (l_s[...] * jnp.exp(m_prev - m_new)
                    + jnp.sum(jnp.exp(logits - m_new), axis=-1, keepdims=True))
        m_s[...] = m_new

        # logit at the target id: select + fused reduce (no one-hot temporary)
        t_s[...] += jnp.sum(jnp.where(col == tgt, logits, 0.0),
                            axis=-1, keepdims=True)

        @pl.when(j == nv - 1)
        def _():
            lse = m_s[...] + jnp.log(l_s[...])
            nll = lse - t_s[...]                             # (tm, 1)
            valid = (tgt >= 0) & (tgt < v_real)
            if padding_idx is not None:
                valid = valid & (tgt != padding_idx)
            tile_loss = jnp.sum(jnp.where(valid, nll, 0.0))
            out_ref[...] = jnp.full(out_ref.shape, tile_loss, jnp.float32)

    return kernel


def cross_entropy_loss_pallas(features, targets, w, b, *,
                              padding_idx=None, tm=256, tv=2048,
                              vmem_budget_bytes=40 * 1024 * 1024):
    """features: [N, H], targets: [N] int, w: [H, V], b: [V] -> scalar summed NLL."""
    n, h = features.shape
    v = w.shape[1]

    # ---- tile sizing --------------------------------------------------------
    tm = min(tm, max(8, _round_up(n, 8)))      # don't over-pad tiny inputs
    tm = _round_up(tm, 8)
    tv = min(tv, _round_up(v, 128))
    tv = _round_up(tv, 128)

    def _vmem_est(tm_, tv_):
        # double-buffered bf16 W tile + bf16 X tile + f32 bias tile
        # + f32 logits working set + f32 scratch accumulators
        return (2 * h * tv_ * 2 + 2 * tm_ * h * 2 + 2 * tv_ * 4
                + tm_ * tv_ * 4 + 3 * tm_ * 4)

    while tv > 128 and _vmem_est(tm, tv) > vmem_budget_bytes:
        tv //= 2
    while tm > 8 and _vmem_est(tm, tv) > vmem_budget_bytes:
        tm //= 2

    n_pad = _round_up(n, tm)
    v_pad = _round_up(v, tv)

    # ---- dtype prep / padding ----------------------------------------------
    x16 = features.astype(jnp.bfloat16)
    w16 = w.astype(jnp.bfloat16)
    b32 = b.reshape(1, v).astype(jnp.float32)
    tgt = targets.reshape(n, 1).astype(jnp.int32)

    if n_pad > n:
        x16 = jnp.pad(x16, ((0, n_pad - n), (0, 0)))
        tgt = jnp.pad(tgt, ((0, n_pad - n), (0, 0)), constant_values=-1)
    if v_pad > v:
        w16 = jnp.pad(w16, ((0, 0), (0, v_pad - v)))
        b32 = jnp.pad(b32, ((0, 0), (0, v_pad - v)), constant_values=-1e30)

    g_tok = n_pad // tm
    g_voc = v_pad // tv

    cost = pl.CostEstimate(
        flops=2 * n_pad * h * v_pad,
        transcendentals=n_pad * v_pad,
        bytes_accessed=(n_pad * h * 2              # features (bf16)
                        + g_tok * v_pad * h * 2    # W streamed per token tile
                        + g_tok * v_pad * 4        # bias per token tile
                        + n_pad * 4                # targets
                        + g_tok * 128 * 4),        # partial losses
    )

    partial = pl.pallas_call(
        _make_ce_kernel(v, padding_idx),
        out_shape=jax.ShapeDtypeStruct((g_tok, 1, 128), jnp.float32),
        grid_spec=pltpu.PrefetchScalarGridSpec(
            num_scalar_prefetch=0,
            grid=(g_tok, g_voc),
            in_specs=[
                pl.BlockSpec((tm, h), lambda i, j: (i, 0)),    # features tile
                pl.BlockSpec((h, tv), lambda i, j: (0, j)),    # weight tile
                pl.BlockSpec((1, tv), lambda i, j: (0, j)),    # bias tile
                pl.BlockSpec((tm, 1), lambda i, j: (i, 0)),    # target tile
            ],
            out_specs=pl.BlockSpec((1, 1, 128), lambda i, j: (i, 0, 0)),
            scratch_shapes=[pltpu.VMEM((tm, 1), jnp.float32),   # running max
                            pltpu.VMEM((tm, 1), jnp.float32),   # running exp-sum
                            pltpu.VMEM((tm, 1), jnp.float32)],  # running tgt logit
        ),
        compiler_params=pltpu.CompilerParams(
            dimension_semantics=("parallel", "arbitrary")),
        cost_estimate=cost,
    )(x16, w16, b32, tgt)

    return jnp.sum(partial[:, 0, 0])


def ds_fairseq_forward(sample, params, *, padding_idx=None):
    """Mirrors DsFairseqModel.forward(sample) -> (loss, sample_size, logging_output)."""
    feats = sample["net_input"]["src_features"]          # [B, T, H]
    targets = sample["target"]                           # [B, T]
    B, T, H = feats.shape

    loss = cross_entropy_loss_pallas(
        feats.reshape(B * T, H),
        targets.reshape(B * T),
        params["w"], params["b"],
        padding_idx=padding_idx,
    )

    ntokens = sample["ntokens"]
    sample_size = ntokens                                 # CrossEntropyCriterion default
    logging_output = {
        "loss": loss,
        "ntokens": ntokens,
        "nsentences": B,
        "sample_size": sample_size,
    }
    return loss, sample_size, logging_output


if __name__ == "__main__":
    # small shapes: batch=2, seq=8, hidden=32, vocab=128
    B, T, H, V = 2, 8, 32, 128
    key = jax.random.PRNGKey(0)
    k_feat, k_w, k_b, k_tgt = jax.random.split(key, 4)

    params = {
        "w": jax.random.normal(k_w, (H, V), jnp.float32) / jnp.sqrt(H),
        "b": jax.random.normal(k_b, (V,), jnp.float32) * 0.01,
    }
    sample = {
        "net_input": {
            "src_features": jax.random.normal(k_feat, (B, T, H), jnp.float32),
        },
        "target": jax.random.randint(k_tgt, (B, T), 0, V, jnp.int32),
        "ntokens": B * T,
    }

    loss, sample_size, logging_output = ds_fairseq_forward(sample, params)
    loss = jax.block_until_ready(loss)

    # reference in plain JAX on the same bf16-rounded MXU inputs
    feats = sample["net_input"]["src_features"].reshape(B * T, H)
    x16 = feats.astype(jnp.bfloat16).astype(jnp.float32)
    w16 = params["w"].astype(jnp.bfloat16).astype(jnp.float32)
    logits = jnp.dot(x16, w16, precision=lax.Precision.HIGHEST) + params["b"]
    lprobs = jax.nn.log_softmax(logits, axis=-1)
    ref = -jnp.sum(jnp.take_along_axis(
        lprobs, sample["target"].reshape(-1, 1), axis=-1))
    assert jnp.allclose(loss, ref, rtol=1e-3, atol=1e-3), (loss, ref)

    print("KERNEL_OK")
</pallas_src>

<mosaic_0001>
module attributes {stable_mosaic.version = 11 : i64} {
  func.func @kernel(%arg0: i32, %arg1: i32, %arg2: memref<16x32xbf16, #tpu.memory_space<vmem>>, %arg3: memref<32x128xbf16, #tpu.memory_space<vmem>>, %arg4: memref<1x128xf32, #tpu.memory_space<vmem>>, %arg5: memref<16x1xi32, #tpu.memory_space<vmem>>, %arg6: memref<1x1x128xf32, #tpu.memory_space<vmem>>, %arg7: memref<16x1xf32, #tpu.memory_space<vmem>>, %arg8: memref<16x1xf32, #tpu.memory_space<vmem>>, %arg9: memref<16x1xf32, #tpu.memory_space<vmem>>) attributes {dimension_semantics = [#tpu.dimension_semantics<parallel>, #tpu.dimension_semantics<arbitrary>], iteration_bounds = array<i64: 1, 1>, scalar_prefetch = 0 : i64, scratch_operands = 3 : i64, tpu.core_type = #tpu.core_type<tc>, window_params = [{transform_indices = @transform_0, window_bounds = array<i64: 16, 32>}, {transform_indices = @transform_1, window_bounds = array<i64: 32, 128>}, {transform_indices = @transform_2, window_bounds = array<i64: 1, 128>}, {transform_indices = @transform_3, window_bounds = array<i64: 16, 1>}, {transform_indices = @transform_4, window_bounds = array<i64: 1, 1, 128>}]} {
    %c0_i32 = arith.constant 0 : i32
    %0 = arith.cmpi eq, %arg1, %c0_i32 : i32
    %1 = arith.extui %0 : i1 to i32
    %c0_i32_0 = arith.constant 0 : i32
    %2 = arith.cmpi ne, %1, %c0_i32_0 : i32
    scf.if %2 {
      %cst_26 = arith.constant -1.000000e+30 : f32
      %42 = vector.broadcast %cst_26 : f32 to vector<16x1xf32>
      %c0_27 = arith.constant 0 : index
      %c0_28 = arith.constant 0 : index
      %43 = vector.load %arg7[%c0_27, %c0_28] : memref<16x1xf32, #tpu.memory_space<vmem>>, vector<16x1xf32>
      tpu.vector_store %arg7[%c0_27, %c0_28], %42 {strides = array<i32>} : memref<16x1xf32, #tpu.memory_space<vmem>>, vector<16x1xf32>,
      %cst_29 = arith.constant 0.000000e+00 : f32
      %44 = vector.broadcast %cst_29 : f32 to vector<16x1xf32>
      %c0_30 = arith.constant 0 : index
      %c0_31 = arith.constant 0 : index
      %45 = vector.load %arg8[%c0_30, %c0_31] : memref<16x1xf32, #tpu.memory_space<vmem>>, vector<16x1xf32>
      tpu.vector_store %arg8[%c0_30, %c0_31], %44 {strides = array<i32>} : memref<16x1xf32, #tpu.memory_space<vmem>>, vector<16x1xf32>,
      %cst_32 = arith.constant 0.000000e+00 : f32
      %46 = vector.broadcast %cst_32 : f32 to vector<16x1xf32>
      %c0_33 = arith.constant 0 : index
      %c0_34 = arith.constant 0 : index
      %47 = vector.load %arg9[%c0_33, %c0_34] : memref<16x1xf32, #tpu.memory_space<vmem>>, vector<16x1xf32>
      tpu.vector_store %arg9[%c0_33, %c0_34], %46 {strides = array<i32>} : memref<16x1xf32, #tpu.memory_space<vmem>>, vector<16x1xf32>,
    } else {
    }
    %c0 = arith.constant 0 : index
    %c0_1 = arith.constant 0 : index
    %3 = vector.load %arg2[%c0, %c0_1] : memref<16x32xbf16, #tpu.memory_space<vmem>>, vector<16x32xbf16>
    %c0_2 = arith.constant 0 : index
    %c0_3 = arith.constant 0 : index
    %4 = vector.load %arg3[%c0_2, %c0_3] : memref<32x128xbf16, #tpu.memory_space<vmem>>, vector<32x128xbf16>
    %cst = arith.constant dense<0.000000e+00> : vector<16x128xf32>
    %5 = tpu.matmul %3, %4, %cst {dimension_numbers = #tpu.dot_dimension_numbers<[1], [0], [0], [1], [0, 0, 1, 1], [], []>} : vector<16x32xbf16>, vector<32x128xbf16>, vector<16x128xf32> -> vector<16x128xf32>
    %c0_4 = arith.constant 0 : index
    %c0_5 = arith.constant 0 : index
    %6 = vector.load %arg4[%c0_4, %c0_5] : memref<1x128xf32, #tpu.memory_space<vmem>>, vector<1x128xf32>
    %7 = vector.broadcast %6 : vector<1x128xf32> to vector<16x128xf32>
    %8 = arith.addf %5, %7 : vector<16x128xf32>
    %c0_6 = arith.constant 0 : index
    %c0_7 = arith.constant 0 : index
    %9 = vector.load %arg5[%c0_6, %c0_7] : memref<16x1xi32, #tpu.memory_space<vmem>>, vector<16x1xi32>
    %c128_i32 = arith.constant 128 : i32
    %10 = arith.muli %arg1, %c128_i32 : i32
    %11 = tpu.iota {dimensions = array<i32: 1>} : vector<16x128xi32>
    %12 = vector.broadcast %10 : i32 to vector<16x128xi32>
    %13 = arith.addi %12, %11 : vector<16x128xi32>
    %c0_8 = arith.constant 0 : index
    %c0_9 = arith.constant 0 : index
    %14 = vector.load %arg7[%c0_8, %c0_9] : memref<16x1xf32, #tpu.memory_space<vmem>>, vector<16x1xf32>
    %cst_10 = arith.constant dense<0xFF800000> : vector<16xf32>
    %15 = vector.multi_reduction <maximumf>, %8, %cst_10 [1] : vector<16x128xf32> to vector<16xf32>
    %16 = vector.shape_cast %15 : vector<16xf32> to vector<16x1xf32>
    %17 = arith.maximumf %14, %16 : vector<16x1xf32>
    %c0_11 = arith.constant 0 : index
    %c0_12 = arith.constant 0 : index
    %18 = vector.load %arg8[%c0_11, %c0_12] : memref<16x1xf32, #tpu.memory_space<vmem>>, vector<16x1xf32>
    %19 = arith.subf %14, %17 : vector<16x1xf32>
    %20 = math.exp %19 : vector<16x1xf32>
    %21 = arith.mulf %18, %20 : vector<16x1xf32>
    %22 = vector.broadcast %17 : vector<16x1xf32> to vector<16x128xf32>
    %23 = arith.subf %8, %22 : vector<16x128xf32>
    %24 = math.exp %23 : vector<16x128xf32>
    %cst_13 = arith.constant dense<0.000000e+00> : vector<16xf32>
    %25 = vector.multi_reduction <add>, %24, %cst_13 [1] : vector<16x128xf32> to vector<16xf32>
    %26 = vector.shape_cast %25 : vector<16xf32> to vector<16x1xf32>
    %27 = arith.addf %21, %26 : vector<16x1xf32>
    %c0_14 = arith.constant 0 : index
    %c0_15 = arith.constant 0 : index
    %28 = vector.load %arg8[%c0_14, %c0_15] : memref<16x1xf32, #tpu.memory_space<vmem>>, vector<16x1xf32>
    tpu.vector_store %arg8[%c0_14, %c0_15], %27 {strides = array<i32>} : memref<16x1xf32, #tpu.memory_space<vmem>>, vector<16x1xf32>,
    %c0_16 = arith.constant 0 : index
    %c0_17 = arith.constant 0 : index
    %29 = vector.load %arg7[%c0_16, %c0_17] : memref<16x1xf32, #tpu.memory_space<vmem>>, vector<16x1xf32>
    tpu.vector_store %arg7[%c0_16, %c0_17], %17 {strides = array<i32>} : memref<16x1xf32, #tpu.memory_space<vmem>>, vector<16x1xf32>,
    %c0_18 = arith.constant 0 : index
    %c0_19 = arith.constant 0 : index
    %30 = vector.load %arg9[%c0_18, %c0_19] : memref<16x1xf32, #tpu.memory_space<vmem>>, vector<16x1xf32>
    %31 = vector.broadcast %9 : vector<16x1xi32> to vector<16x128xi32>
    %32 = arith.cmpi eq, %13, %31 : vector<16x128xi32>
    %cst_20 = arith.constant 0.000000e+00 : f32
    %33 = vector.broadcast %cst_20 : f32 to vector<16x128xf32>
    %34 = arith.select %32, %8, %33 : vector<16x128xi1>, vector<16x128xf32>
    %cst_21 = arith.constant dense<0.000000e+00> : vector<16xf32>
    %35 = vector.multi_reduction <add>, %34, %cst_21 [1] : vector<16x128xf32> to vector<16xf32>
    %36 = vector.shape_cast %35 : vector<16xf32> to vector<16x1xf32>
    %37 = arith.addf %30, %36 : vector<16x1xf32>
    %c0_22 = arith.constant 0 : index
    %c0_23 = arith.constant 0 : index
    %38 = vector.load %arg9[%c0_22, %c0_23] : memref<16x1xf32, #tpu.memory_space<vmem>>, vector<16x1xf32>
    tpu.vector_store %arg9[%c0_22, %c0_23], %37 {strides = array<i32>} : memref<16x1xf32, #tpu.memory_space<vmem>>, vector<16x1xf32>,
    %c0_i32_24 = arith.constant 0 : i32
    %39 = arith.cmpi eq, %arg1, %c0_i32_24 : i32
    %40 = arith.extui %39 : i1 to i32
    %c0_i32_25 = arith.constant 0 : i32
    %41 = arith.cmpi ne, %40, %c0_i32_25 : i32
    scf.if %41 {
      %c0_26 = arith.constant 0 : index
      %c0_27 = arith.constant 0 : index
      %42 = vector.load %arg7[%c0_26, %c0_27] : memref<16x1xf32, #tpu.memory_space<vmem>>, vector<16x1xf32>
      %c0_28 = arith.constant 0 : index
      %c0_29 = arith.constant 0 : index
      %43 = vector.load %arg8[%c0_28, %c0_29] : memref<16x1xf32, #tpu.memory_space<vmem>>, vector<16x1xf32>
      %44 = math.log %43 : vector<16x1xf32>
      %45 = arith.addf %42, %44 : vector<16x1xf32>
      %c0_30 = arith.constant 0 : index
      %c0_31 = arith.constant 0 : index
      %46 = vector.load %arg9[%c0_30, %c0_31] : memref<16x1xf32, #tpu.memory_space<vmem>>, vector<16x1xf32>
      %47 = arith.subf %45, %46 : vector<16x1xf32>
      %c0_i32_32 = arith.constant 0 : i32
      %48 = vector.broadcast %c0_i32_32 : i32 to vector<16x1xi32>
      %49 = arith.cmpi sge, %9, %48 : vector<16x1xi32>
      %c128_i32_33 = arith.constant 128 : i32
      %50 = vector.broadcast %c128_i32_33 : i32 to vector<16x1xi32>
      %51 = arith.cmpi slt, %9, %50 : vector<16x1xi32>
      %52 = arith.andi %49, %51 : vector<16x1xi1>
      %cst_34 = arith.constant 0.000000e+00 : f32
      %53 = vector.broadcast %cst_34 : f32 to vector<16x1xf32>
      %54 = arith.select %52, %47, %53 : vector<16x1xi1>, vector<16x1xf32>
      %55 = vector.shape_cast %54 : vector<16x1xf32> to vector<1x16x1xf32>
      %cst_35 = arith.constant dense<0.000000e+00> : vector<1xf32>
      %56 = vector.multi_reduction <add>, %55, %cst_35 [1, 2] : vector<1x16x1xf32> to vector<1xf32>
      %57 = vector.shape_cast %56 : vector<1xf32> to vector<1x1x1xf32>
      %58 = vector.extract %57[0, 0, 0] : f32 from vector<1x1x1xf32>
      %59 = vector.broadcast %58 : f32 to vector<1x1x128xf32>
      %c0_36 = arith.constant 0 : index
      %c0_37 = arith.constant 0 : index
      %c0_38 = arith.constant 0 : index
      %60 = vector.load %arg6[%c0_36, %c0_37, %c0_38] : memref<1x1x128xf32, #tpu.memory_space<vmem>>, vector<1x1x128xf32>
      tpu.vector_store %arg6[%c0_36, %c0_37, %c0_38], %59 {strides = array<i32>} : memref<1x1x128xf32, #tpu.memory_space<vmem>>, vector<1x1x128xf32>,
    } else {
    }
    return
  }
  func.func @transform_0(%arg0: i32, %arg1: i32) -> (i32, i32) {
    %c0_i32 = arith.constant 0 : i32
    %c0_i32_0 = arith.constant 0 : i32
    return %arg0, %c0_i32 : i32, i32
  }
  func.func @transform_1(%arg0: i32, %arg1: i32) -> (i32, i32) {
    %c0_i32 = arith.constant 0 : i32
    %c0_i32_0 = arith.constant 0 : i32
    return %c0_i32, %arg1 : i32, i32
  }
  func.func @transform_2(%arg0: i32, %arg1: i32) -> (i32, i32) {
    %c0_i32 = arith.constant 0 : i32
    %c0_i32_0 = arith.constant 0 : i32
    return %c0_i32, %arg1 : i32, i32
  }
  func.func @transform_3(%arg0: i32, %arg1: i32) -> (i32, i32) {
    %c0_i32 = arith.constant 0 : i32
    %c0_i32_0 = arith.constant 0 : i32
    return %arg0, %c0_i32 : i32, i32
  }
  func.func @transform_4(%arg0: i32, %arg1: i32) -> (i32, i32, i32) {
    %c0_i32 = arith.constant 0 : i32
    %c0_i32_0 = arith.constant 0 : i32
    %c0_i32_1 = arith.constant 0 : i32
    return %arg0, %c0_i32, %c0_i32_0 : i32, i32, i32
  }
}

</mosaic_0001>

<llo_original>
// kernel: tpu_custom_call.1
$region0: #{tpu_custom_call.1}
  #allocation0 [shape = 'u32[]', space=smem, size = 0x4, offset = 0x4, fixed_abs, tag = 'smem constant byte address 0x4 - core index']
  #allocation1 [shape = 'u32[144,128]{1,0:T(1,128)}', space=vmem, size = 0x12000, scoped, tag = 'internal scratch']
  #allocation2 [shape = 'f32[16,1]{1,0:T(8,128)}', space=vmem, size = 0x2000, scoped, tag = 'scratch operand']
  #allocation3 [shape = 'f32[16,1]{1,0:T(8,128)}', space=vmem, size = 0x2000, scoped, tag = 'scratch operand']
  #allocation4 [shape = 'f32[16,1]{1,0:T(8,128)}', space=vmem, size = 0x2000, scoped, tag = 'scratch operand']
  %s0 = inlined_call_operand.hbm [shape: bf16[16,32], index: 0, kind: input, shape index: {}]
  %s1 = inlined_call_operand.vmem [shape: bf16[32,128], index: 1, kind: input, shape index: {}]
  %s2 = inlined_call_operand.vmem [shape: f32[1,128], index: 2, kind: input, shape index: {}]
  %s3 = inlined_call_operand.vmem [shape: s32[16,1], index: 3, kind: input, shape index: {}]
  %s4 = inlined_call_operand.hbm [shape: f32[1,1,128], index: 4, kind: output, shape index: {}]
  %s5 = sld [smem:[#allocation0]]
  $region38: #{tpu_custom_call.1} parent=0
    _
  %s7 = ssub.s32 1, %s5
  %s8 = scalar_select 0, %s7, %s5
  $region1: #{tpu_custom_call.1} parent=0
    #allocation5 [shape = 'u8[4096]{0}', space=vmem, size = 0x1000, scoped, tag = 'input window, operand 0, single buffered']
    #allocation6 [shape = 's32[1]{0}', space=sflag, size = 0x4, scoped, tag = 'scoped memory for tpu_custom_call.1']
    #allocation7 [shape = 's32[1]{0}', space=sflag, size = 0x4, scoped, tag = 'scoped memory for tpu_custom_call.1']
    #allocation8 [shape = 'u8[512]{0}', space=vmem, size = 0x400, scoped, tag = 'output window, operand 0, single buffered']
    %9 = vsyncpa [#allocation6], 0
    %10 = vsyncpa [#allocation7], 0
    // Predicated region
    $region2: #{tpu_custom_call.1} parent=1 // pred_check
      _
    $region3: #{tpu_custom_call.1} parent=1 // pred_check_branch
      %12 = sbr.rel (0) target = $region5
    $region4: #{tpu_custom_call.1} parent=1 // pred_region
      %s14 = ssub.s32 128, 128
      %15 = vsyncadd [#allocation6], %s14
      %s16 = sshll.u32 [#allocation5], 4
      %s17 = int_to_ptr.vmem [resolvable:$true] %s16
      %22 = dma.hbm_to_vmem [thread:$0]  %s0, 128, %s17, [#allocation6], 64, 64, 4
    $region5: #{tpu_custom_call.1} parent=1 // pred_fallthru
      _
    // Predicated region
    $region6: #{tpu_custom_call.1} parent=1 // pred_check
      _
    $region7: #{tpu_custom_call.1} parent=1 // pred_check_branch
      %24 = sbr.rel (0) target = $region9
    $region8: #{tpu_custom_call.1} parent=1 // pred_region
      _
    $region9: #{tpu_custom_call.1} parent=1 // pred_fallthru
      _
    // Predicated region
    $region10: #{tpu_custom_call.1} parent=1 // pred_check
      _
    $region11: #{tpu_custom_call.1} parent=1 // pred_check_branch
      %26 = sbr.rel (0) target = $region13
    $region12: #{tpu_custom_call.1} parent=1 // pred_region
      _
    $region13: #{tpu_custom_call.1} parent=1 // pred_fallthru
      _
    // Predicated region
    $region14: #{tpu_custom_call.1} parent=1 // pred_check
      _
    $region15: #{tpu_custom_call.1} parent=1 // pred_check_branch
      %28 = sbr.rel (0) target = $region17
    $region16: #{tpu_custom_call.1} parent=1 // pred_region
      _
    $region17: #{tpu_custom_call.1} parent=1 // pred_fallthru
      _
    // Predicated region
    $region18: #{tpu_custom_call.1} parent=1 // pred_check
      _
    $region19: #{tpu_custom_call.1} parent=1 // pred_check_branch
      %30 = sbr.rel (0) target = $region21
    $region20: #{tpu_custom_call.1} parent=1 // pred_region
      %31 = dma.done [#allocation6], 128
    $region21: #{tpu_custom_call.1} parent=1 // pred_fallthru
      _
    %p33 = scmp.eq.s32.totalorder 0, 0
    // Predicated region
    $region22: #{tpu_custom_call.1} parent=1 // pred_check
      %p34 = pneg %p33
    $region23: #{tpu_custom_call.1} parent=1 // pred_check_branch
      %36 = sbr.rel (%p34) target = $region25
    $region24: #{tpu_custom_call.1} parent=1 // pred_region
      %vm37 = vcmask 7168
      %38 = vst.msk [vmem:[#allocation2] sm:$0xff] %vm37, -1e+30
      %39 = vst.msk [vmem:[#allocation2 + $0x8] sm:$0xff] %vm37, -1e+30
      %40 = vst.msk [vmem:[#allocation3] sm:$0xff] %vm37, 0.0
      %41 = vst.msk [vmem:[#allocation3 + $0x8] sm:$0xff] %vm37, 0.0
      %42 = vst.msk [vmem:[#allocation4] sm:$0xff] %vm37, 0.0
      %43 = vst.msk [vmem:[#allocation4 + $0x8] sm:$0xff] %vm37, 0.0
    $region25: #{tpu_custom_call.1} parent=1 // pred_fallthru
      _
    %v44 = vld [vmem:[#allocation5] sm:$0xf]
    %v45 = vld [vmem:[#allocation5 + $0x4] sm:$0xf]
    %v46 = vld [vmem:[%s1] sm:$0xf]
    %v47 = vld [vmem:[%s1 + $0x4] sm:$0xf]
    %v48 = vld [vmem:[%s1 + $0x8] sm:$0xf]
    %v49 = vld [vmem:[%s1 + $0xc] sm:$0xf]
    %v50 = vld [vmem:[%s2] sm:$0x1]
    %v52 = vlaneseq
    %v53 = vshrl.u32 %v52, 7
    %v54 = vsub.s32 0, %v53
    %v55 = vrot.slane %v50, %v54
    %v59 = vunpack.c.l.b16 %v44
    %v60 = vunpack.c.l.b16 %v45
    %v61 = vpack.c.b16 %v60, %v59
    %v66 = vunpack.c.l.b16 %v46
    %v67 = vunpack.c.l.b16 %v47
    %v68 = vunpack.c.l.b16 %v48
    %v69 = vunpack.c.l.b16 %v49
    %v70 = vpack.c.b16 %v67, %v66
    %v71 = vpack.c.b16 %v69, %v68
    %vm74 = vcmask 261120
    %v76 = vsel %vm74, %v61, 0
    %78 = vmatprep.subr.bf16.mxu0 0
    %79 = vmatpush1.bf16.msra.mxu0 0
    %80 = vmatprep.subr.bf16.mxu0 0
    %81 = vmatpush1.bf16.msra.mxu0 0
    %82 = vmatprep.subr.bf16.mxu0 0
    %83 = vmatpush1.bf16.msra.mxu0 0
    %84 = vmatprep.subr.bf16.mxu0 0
    %85 = vmatpush1.bf16.msra.mxu0 0
    %86 = vmatprep.subr.bf16.mxu0 0
    %87 = vmatpush1.bf16.msra.mxu0 0
    %88 = vmatprep.subr.bf16.mxu0 0
    %89 = vmatpush1.bf16.msra.mxu0 0
    %90 = vmatprep.subr.bf16.mxu0 0
    %91 = vmatpush1.bf16.msra.mxu0 %v71
    %92 = vmatprep.subr.bf16.mxu0 0
    %93 = vmatpush1.bf16.msra.mxu0 %v70
    %94 = vmatprep.subr.bf16.mxu0 0
    %95 = vmatpush2.bf16.msra.mxu0 0
    %96 = vmatprep.subr.bf16.mxu0 0
    %97 = vmatpush2.bf16.msra.mxu0 0
    %98 = vmatprep.subr.bf16.mxu0 0
    %99 = vmatpush2.bf16.msra.mxu0 0
    %100 = vmatprep.subr.bf16.mxu0 0
    %101 = vmatpush2.bf16.msra.mxu0 0
    %102 = vmatprep.subr.bf16.mxu0 0
    %103 = vmatpush2.bf16.msra.mxu0 0
    %104 = vmatprep.subr.bf16.mxu0 0
    %105 = vmatpush2.bf16.msra.mxu0 0
    %106 = vmatprep.subr.bf16.mxu0 0
    %107 = vmatpush2.bf16.msra.mxu0 0
    %108 = vmatprep.subr.bf16.mxu0 0
    %109 = vmatpush2.bf16.msra.mxu0 0
    %110 = vmatprep.mubr.bf16.mxu0 0
    %111 = vmatmul.mubr.bf16.gmra.mxu0 %v76
    %v112 = vpop.f32.mrf.mxu0
    %v113 = vadd.f32 %v55, %v112
    %v114 = vpop.f32.mrf.mxu0
    %v115 = vpop.f32.mrf.mxu0
    %v116 = vadd.f32 %v55, %v115
    %v117 = vpop.f32.mrf.mxu0
    %118 = vdwg.mxu0
    %v119 = vld [vmem:[%s3] sm:$0xff]
    %v120 = vld [vmem:[%s3 + $0x8] sm:$0xff]
    %s121 = smul.u32 0, 128
    %v122 = vlaneseq
    %v123 = vand.u32 %v122, 127
    %v124 = vstv %s121
    %v125 = vadd.s32 %v124, %v123
    %v126 = vld [vmem:[#allocation2] sm:$0xff]
    %v127 = vld [vmem:[#allocation2 + $0x8] sm:$0xff]
    %128 = vmax.xlane.f32.xlu0 %v113
    %v129 = vpop.xlane.xlu0 %128
    %130 = vmax.xlane.f32.xlu0 %v116
    %v131 = vpop.xlane.xlu0 %130
    %v132 = vmax.f32 %v126, %v129
    %v133 = vmax.f32 %v127, %v131
    %v134 = vld [vmem:[#allocation3] sm:$0xff]
    %v135 = vld [vmem:[#allocation3 + $0x8] sm:$0xff]
    %v136 = vsub.f32 %v126, %v132
    %v137 = vsub.f32 %v127, %v133
    %v138 = vmul.f32 %v136, 1.442695
    %v139 = vpow.pop %v138
    %v140 = vmul.f32 %v137, 1.442695
    %v141 = vpow.pop %v140
    %v142 = vmul.f32 %v134, %v139
    %v143 = vmul.f32 %v135, %v141
    %145 = vset.pattern.permute.xlu0 0
    %146 = vperm.xlu0 %145, %v132
    %v147 = vpop.permute.xlu0 %146
    %150 = vset.pattern.permute.xlu0 0
    %151 = vperm.xlu0 %150, %v133
    %v152 = vpop.permute.xlu0 %151
    %v154 = vsub.f32 %v113, %v147
    %v155 = vsub.f32 %v116, %v152
    %v156 = vmul.f32 %v154, 1.442695
    %v157 = vpow.pop %v156
    %v158 = vmul.f32 %v155, 1.442695
    %v159 = vpow.pop %v158
    %160 = vadd.xlane.f32.xlu0 %v157
    %v161 = vpop.xlane.xlu0 %160
    %162 = vadd.xlane.f32.xlu0 %v159
    %v163 = vpop.xlane.xlu0 %162
    %v164 = vadd.f32 %v142, %v161
    %v165 = vadd.f32 %v143, %v163
    %vm166 = vcmask 7168
    %167 = vst.msk [vmem:[#allocation3] sm:$0xff] %vm166, %v164
    %168 = vst.msk [vmem:[#allocation3 + $0x8] sm:$0xff] %vm166, %v165
    %169 = vst.msk [vmem:[#allocation2] sm:$0xff] %vm166, %v132
    %170 = vst.msk [vmem:[#allocation2 + $0x8] sm:$0xff] %vm166, %v133
    %v171 = vld [vmem:[#allocation4] sm:$0xff]
    %v172 = vld [vmem:[#allocation4 + $0x8] sm:$0xff]
    %173 = vset.pattern.permute.xlu0 0
    %174 = vperm.xlu0 %173, %v119
    %v175 = vpop.permute.xlu0 %174
    %176 = vset.pattern.permute.xlu0 0
    %177 = vperm.xlu0 %176, %v120
    %v178 = vpop.permute.xlu0 %177
    %vm179 = vcmp.eq.s32.totalorder %v125, %v175
    %vm180 = vcmp.eq.s32.totalorder %v125, %v178
    %v181 = vsel %vm179, %v113, 0.0
    %v182 = vsel %vm180, %v116, 0.0
    %183 = vadd.xlane.f32.xlu0 %v181
    %v184 = vpop.xlane.xlu0 %183
    %185 = vadd.xlane.f32.xlu0 %v182
    %v186 = vpop.xlane.xlu0 %185
    %v187 = vadd.f32 %v171, %v184
    %v188 = vadd.f32 %v172, %v186
    %189 = vst.msk [vmem:[#allocation4] sm:$0xff] %vm166, %v187
    %190 = vst.msk [vmem:[#allocation4 + $0x8] sm:$0xff] %vm166, %v188
    // Predicated region
    $region26: #{tpu_custom_call.1} parent=1 // pred_check
      %p191 = pneg %p33
    $region27: #{tpu_custom_call.1} parent=1 // pred_check_branch
      %193 = sbr.rel (%p191) target = $region29
    $region28: #{tpu_custom_call.1} parent=1 // pred_region
      %v194 = vld [vmem:[#allocation2] sm:$0xff]
      %v195 = vld [vmem:[#allocation2 + $0x8] sm:$0xff]
      %v196 = vld [vmem:[#allocation3] sm:$0xff]
      %v197 = vld [vmem:[#allocation3 + $0x8] sm:$0xff]
      %v198 = vlog2.pop %v196
      %v199 = vmul.f32 %v198, 0.6931472
      %v200 = vlog2.pop %v197
      %v201 = vmul.f32 %v200, 0.6931472
      %v202 = vadd.f32 %v194, %v199
      %v203 = vadd.f32 %v195, %v201
      %v204 = vld [vmem:[#allocation4] sm:$0xff]
      %v205 = vld [vmem:[#allocation4 + $0x8] sm:$0xff]
      %v206 = vsub.f32 %v202, %v204
      %v207 = vsub.f32 %v203, %v205
      %vm208 = vcmp.ge.s32.totalorder %v119, 0
      %vm209 = vcmp.ge.s32.totalorder %v120, 0
      %vm210 = vcmp.lt.s32.totalorder %v119, 128
      %vm211 = vcmp.lt.s32.totalorder %v120, 128
      %vm212 = vmand %vm208, %vm210
      %vm213 = vmand %vm209, %vm211
      %v214 = vsel %vm212, %v206, 0.0
      %v215 = vsel %vm213, %v207, 0.0
      %v216 = vsel %vm166, %v214, 0.0
      %v217 = vsel %vm166, %v215, 0.0
      %v218 = vadd.f32 %v216, %v217
      %219 = vadd.xlane.f32.xlu0 %v218
      %v220 = vpop.xlane.xlu0 %219
      %v221 = vrot.slane %v220, 4
      %v222 = vadd.f32 %v220, %v221
      %v223 = vrot.slane %v222, 2
      %v224 = vadd.f32 %v222, %v223
      %v225 = vrot.slane %v224, 1
      %v226 = vadd.f32 %v224, %v225
      %s227 = vtos %v226
      %v228 = vstv %s227
      %229 = vst [vmem:[#allocation8] sm:$0x1] %v228
    $region29: #{tpu_custom_call.1} parent=1 // pred_fallthru
      _
    // Predicated region
    $region30: #{tpu_custom_call.1} parent=1 // pred_check
      _
    $region31: #{tpu_custom_call.1} parent=1 // pred_check_branch
      %231 = sbr.rel (0) target = $region33
    $region32: #{tpu_custom_call.1} parent=1 // pred_region
      %s233 = ssub.s32 16, 16
      %234 = vsyncadd [#allocation7], %s233
      %s236 = sshll.u32 [#allocation8], 4
      %s237 = int_to_ptr.vmem [resolvable:$true] %s236
      %239 = dma.vmem_to_hbm [thread:$0]  %s237, 16, %s4, [#allocation7]
    $region33: #{tpu_custom_call.1} parent=1 // pred_fallthru
      _
    // Predicated region
    $region34: #{tpu_custom_call.1} parent=1 // pred_check
      _
    $region35: #{tpu_custom_call.1} parent=1 // pred_check_branch
      %241 = sbr.rel (0) target = $region37
    $region36: #{tpu_custom_call.1} parent=1 // pred_region
      %242 = dma.done [#allocation7], 16
    $region37: #{tpu_custom_call.1} parent=1 // pred_fallthru
      _
    %243 = vsyncpa [#allocation6], 1
    %244 = vsyncpa [#allocation7], 1

</llo_original>
